<compile_context>
chip_gen: v7x
topology: tpu7x:2x2x1
jax: 0.10.0
libtpu: 0.0.40
codegen_flags: <defaults>
</compile_context>

<pallas_src>
import functools

import jax
import jax.numpy as jnp
from jax.experimental import pallas as pl
from jax.experimental.pallas import tpu as pltpu


def _pnp_fused_kernel(thr_ref, px0_ref, g_ref, c_ref, out_ref, acc_ref, *, unroll):
    """Runs `unroll` PnP proximal-gradient iterations per grid step.

    thr_ref : SMEM (1, n_pad) per-iteration soft-threshold schedule
    px0_ref : VMEM (TB, D) initialization (read only at iteration-block 0)
    g_ref   : VMEM (D, D) f32, G = tau * A^T A  (resident across all steps)
    c_ref   : VMEM (TB, D) f32, c = tau * (y @ A) (resident across all steps)
    out_ref : VMEM (unroll, TB, D) estimates produced by this grid step
    acc_ref : VMEM (TB, D) f32 scratch carrying Px across iteration blocks
    """
    s = pl.program_id(1)  # iteration-block index (inner, serial grid axis)

    @pl.when(s == 0)
    def _():
        acc_ref[...] = px0_ref[...]

    px = acc_ref[...]
    g = g_ref[...]
    c = c_ref[...]

    # TODO(synk): at very small batch the per-iteration MXU cost is dominated by
    # re-loading the constant G into the systolic array each iteration; pinning
    # G via pltpu.matmul_push_rhs / matmul_acc_lhs / matmul_pop would remove
    # that, but the portable jnp.dot path is kept here for robustness.
    for u in range(unroll):  # static unroll -> visible to the LLO scheduler
        thr = thr_ref[0, s * unroll + u]
        # gradient step: z = Px - Px @ (tau A^T A) + tau (y @ A)  (one MXU matmul)
        z = px + c - jnp.dot(px, g, preferred_element_type=jnp.float32)
        # regularizer proximal step (soft-threshold) on the VPU:
        #   S_thr(z) = z - clip(z, -thr, thr)
        px = z - jnp.clip(z, -thr, thr)
        out_ref[u] = px

    acc_ref[...] = px


def pnp_solve_all(px0, g, c, thrs, *, unroll=8, batch_tile=8):
    """One fused kernel launch running all iterations; returns (n, B, D) estimates."""
    B, D = px0.shape
    n = int(thrs.shape[-1])
    assert B % 8 == 0 and D % 128 == 0, "pad B to x8 and D to x128 before calling"

    u = min(unroll, n)
    n_steps = pl.cdiv(n, u)
    n_pad = n_steps * u
    tb = min(batch_tile, B)
    assert B % tb == 0

    # Pad the threshold schedule; padded iterations write into slabs that are
    # sliced off below (their results are never consumed).
    thrs = thrs.reshape(1, n).astype(jnp.float32)
    thrs_pad = jnp.concatenate(
        [thrs, jnp.full((1, n_pad - n), thrs[0, -1], jnp.float32)], axis=-1)

    kernel = functools.partial(_pnp_fused_kernel, unroll=u)

    out = pl.pallas_call(
        kernel,
        out_shape=jax.ShapeDtypeStruct((n_pad, B, D), jnp.float32),
        grid_spec=pltpu.PrefetchScalarGridSpec(
            num_scalar_prefetch=0,
            grid=(B // tb, n_steps),
            in_specs=[
                # full (padded) threshold schedule, resident in SMEM
                pl.BlockSpec((1, n_pad), lambda b, s: (0, 0),
                             memory_space=pltpu.MemorySpace.SMEM),
                # initialization / Gram / linear term: index constant over the
                # iteration axis -> DMA'd once per batch tile, stay resident
                pl.BlockSpec((tb, D), lambda b, s: (b, 0)),
                pl.BlockSpec((D, D), lambda b, s: (0, 0)),
                pl.BlockSpec((tb, D), lambda b, s: (b, 0)),
            ],
            # one (u, tb, D) slab of estimates per grid step
            out_specs=pl.BlockSpec((u, tb, D), lambda b, s: (s, b, 0)),
            scratch_shapes=[pltpu.VMEM((tb, D), jnp.float32)],
        ),
        compiler_params=pltpu.CompilerParams(
            # batch tiles are independent (megacore-parallel on v7x); the
            # iteration axis is a loop-carried recursion.
            # NOTE: for large D, raise vmem_limit_bytes / stream G in D-chunks.
            dimension_semantics=("parallel", "arbitrary")),
    )(thrs_pad, px0, g, c)

    return out[:n]


class PnPGradientSolver:
    """Concrete JAX/Pallas instantiation of the abstract `Solver` base class."""

    def __init__(self, a, tau=0.3, lam=0.1):
        self._a = jnp.asarray(a, jnp.float32)
        self._x = None
        self._Px = None
        self._current_iteration = 0
        self._max_iterations = None
        self._y = None
        self._all_estimates = None
        self.tau = float(tau)
        self.lam = float(lam)

    # ---- abstract-method instantiations -------------------------------------
    def name(self):
        return "pnp_proximal_gradient"

    def params_strings(self):
        return [f"tau={self.tau}", f"lam={self.lam}"]

    def sigma_denoise(self, iteration):
        # geometric decay of the denoiser noise level (iterations start at 1)
        return 0.1 * (0.9 ** (iteration - 1))

    def prepare_solver_data(self):
        # Precompute the fused-kernel operands once per solve:
        #   G = tau * A^T A,  c = tau * (y @ A)
        # Kept in f32: at small B/D the kernel is step-overhead bound, so bf16
        # buys no speed and only perturbs the proximal-gradient fixed point.
        self._g = (self.tau * (self._a.T @ self._a)).astype(jnp.float32)
        self._c = (self.tau * (self._y @ self._a)).astype(jnp.float32)

    def use_task_gradients(self):
        return True

    def use_task_proximal(self):
        return False

    def iterate(self):
        # All iterations were executed inside one fused Pallas kernel; iterate()
        # just exposes the estimate of the current iteration. Preconditioner is
        # `no_preco` (identity), so x tracks Px.
        self._Px = self._all_estimates[self._current_iteration - 1]
        self._x = self._Px

    # ---- base-class forward (generator semantics preserved) -----------------
    def forward(self, inputs, initialization, max_iterations):
        self._current_iteration = 0
        if max_iterations < 0:
            raise ValueError('The number of iterations should be a positive integer.')
        self._max_iterations = max_iterations
        self._y = jnp.asarray(inputs["y"], jnp.float32)      # task.set_inputs
        self._Px = jnp.asarray(initialization, jnp.float32)
        self.prepare_solver_data()
        if max_iterations > 0:
            # no_preco.inverse is the identity
            self._x = self._Px
            thrs = jnp.array(
                [[self.lam * self.sigma_denoise(i)
                  for i in range(1, max_iterations + 1)]], jnp.float32)
            # single fused launch for all iterations
            self._all_estimates = pnp_solve_all(self._Px, self._g, self._c, thrs)
        for self._current_iteration in range(1, 1 + max_iterations):
            self.iterate()
            yield self._Px
        # TODO(synk): task.post_process is abstract in the reference; identity here.
        yield self._Px


def _reference_recursion(px0, g, c, thrs):
    """Pure-JAX reference of the same PnP recursion (for verification)."""
    outs = []
    px = px0
    for i in range(thrs.shape[-1]):
        z = px + c - px @ g
        thr = thrs.reshape(-1)[i]
        px = z - jnp.clip(z, -thr, thr)
        outs.append(px)
    return jnp.stack(outs)


if __name__ == "__main__":
    key = jax.random.PRNGKey(0)
    ka, kx, kn = jax.random.split(key, 3)
    B, D, M = 8, 128, 128
    n_iter = 5

    a = jax.random.normal(ka, (M, D), jnp.float32) / jnp.sqrt(D)
    x_true = jax.random.normal(kx, (B, D), jnp.float32)
    y = x_true @ a.T + 0.01 * jax.random.normal(kn, (B, M), jnp.float32)
    initialization = jnp.zeros((B, D), jnp.float32)

    solver = PnPGradientSolver(a, tau=0.3, lam=0.1)
    estimates = list(solver.forward({"y": y}, initialization, max_iterations=n_iter))

    final = jax.block_until_ready(estimates[-1])
    assert final.shape == (B, D)
    assert len(estimates) == n_iter + 1  # one yield per iteration + post-process yield
    assert bool(jnp.all(jnp.isfinite(final)))

    # verify against a pure-JAX reference of the same recursion
    thrs = jnp.array([solver.lam * solver.sigma_denoise(i)
                      for i in range(1, n_iter + 1)], jnp.float32)
    ref = _reference_recursion(initialization, solver._g, solver._c, thrs)
    got = jnp.stack(estimates[:n_iter])
    max_err = float(jnp.max(jnp.abs(got - ref)))
    assert bool(jnp.allclose(got, ref, rtol=2e-2, atol=2e-2)), max_err

    print("KERNEL_OK")
</pallas_src>

<mosaic_0001>
module attributes {stable_mosaic.version = 11 : i64} {
  func.func @_pnp_fused_kernel(%arg0: i32, %arg1: i32, %arg2: memref<1x5xf32, #tpu.memory_space<smem>>, %arg3: memref<8x128xf32, #tpu.memory_space<vmem>>, %arg4: memref<128x128xf32, #tpu.memory_space<vmem>>, %arg5: memref<8x128xf32, #tpu.memory_space<vmem>>, %arg6: memref<5x8x128xf32, #tpu.memory_space<vmem>>, %arg7: memref<8x128xf32, #tpu.memory_space<vmem>>) attributes {dimension_semantics = [#tpu.dimension_semantics<parallel>, #tpu.dimension_semantics<arbitrary>], iteration_bounds = array<i64: 1, 1>, scalar_prefetch = 0 : i64, scratch_operands = 1 : i64, tpu.core_type = #tpu.core_type<tc>, window_params = [{transform_indices = @transform_0, window_bounds = array<i64: 1, 5>}, {transform_indices = @transform_1, window_bounds = array<i64: 8, 128>}, {pipeline_mode = #tpu.pipeline_mode<synchronous>, transform_indices = @transform_2, window_bounds = array<i64: 128, 128>}, {transform_indices = @transform_3, window_bounds = array<i64: 8, 128>}, {transform_indices = @transform_4, window_bounds = array<i64: 5, 8, 128>}]} {
    %c0_i32 = arith.constant 0 : i32
    %0 = arith.cmpi eq, %arg1, %c0_i32 : i32
    %1 = arith.extui %0 : i1 to i32
    %c0_i32_0 = arith.constant 0 : i32
    %2 = arith.cmpi ne, %1, %c0_i32_0 : i32
    scf.if %2 {
      %c0_38 = arith.constant 0 : index
      %c0_39 = arith.constant 0 : index
      %87 = vector.load %arg3[%c0_38, %c0_39] : memref<8x128xf32, #tpu.memory_space<vmem>>, vector<8x128xf32>
      %c0_40 = arith.constant 0 : index
      %c0_41 = arith.constant 0 : index
      %88 = vector.load %arg7[%c0_40, %c0_41] : memref<8x128xf32, #tpu.memory_space<vmem>>, vector<8x128xf32>
      tpu.vector_store %arg7[%c0_40, %c0_41], %87 {strides = array<i32>} : memref<8x128xf32, #tpu.memory_space<vmem>>, vector<8x128xf32>,
    } else {
    }
    %c0 = arith.constant 0 : index
    %c0_1 = arith.constant 0 : index
    %3 = vector.load %arg7[%c0, %c0_1] : memref<8x128xf32, #tpu.memory_space<vmem>>, vector<8x128xf32>
    %c0_2 = arith.constant 0 : index
    %c0_3 = arith.constant 0 : index
    %4 = vector.load %arg4[%c0_2, %c0_3] : memref<128x128xf32, #tpu.memory_space<vmem>>, vector<128x128xf32>
    %c0_4 = arith.constant 0 : index
    %c0_5 = arith.constant 0 : index
    %5 = vector.load %arg5[%c0_4, %c0_5] : memref<8x128xf32, #tpu.memory_space<vmem>>, vector<8x128xf32>
    %c5_i32 = arith.constant 5 : i32
    %6 = arith.muli %arg1, %c5_i32 : i32
    %c0_i32_6 = arith.constant 0 : i32
    %7 = arith.addi %6, %c0_i32_6 : i32
    %c0_7 = arith.constant 0 : index
    %8 = arith.index_cast %7 : i32 to index
    %9 = memref.load %arg2[%c0_7, %8] : memref<1x5xf32, #tpu.memory_space<smem>>
    %10 = arith.addf %3, %5 : vector<8x128xf32>
    %cst = arith.constant dense<0.000000e+00> : vector<8x128xf32>
    %11 = tpu.matmul %3, %4, %cst {dimension_numbers = #tpu.dot_dimension_numbers<[1], [0], [0], [1], [0, 0, 1, 1], [], []>} : vector<8x128xf32>, vector<128x128xf32>, vector<8x128xf32> -> vector<8x128xf32>
    %12 = arith.subf %10, %11 : vector<8x128xf32>
    %cst_8 = arith.constant 0.000000e+00 : f32
    %13 = arith.subf %cst_8, %9 : f32
    %14 = vector.broadcast %13 : f32 to vector<8x128xf32>
    %15 = arith.maximumf %14, %12 : vector<8x128xf32>
    %16 = vector.broadcast %9 : f32 to vector<8x128xf32>
    %17 = arith.minimumf %16, %15 : vector<8x128xf32>
    %18 = arith.subf %12, %17 : vector<8x128xf32>
    %c0_9 = arith.constant 0 : index
    %c0_10 = arith.constant 0 : index
    %c0_11 = arith.constant 0 : index
    %19 = vector.load %arg6[%c0_9, %c0_10, %c0_11] : memref<5x8x128xf32, #tpu.memory_space<vmem>>, vector<1x8x128xf32>
    %20 = vector.shape_cast %19 : vector<1x8x128xf32> to vector<8x128xf32>
    %21 = vector.shape_cast %18 : vector<8x128xf32> to vector<1x8x128xf32>
    tpu.vector_store %arg6[%c0_9, %c0_10, %c0_11], %21 {strides = array<i32>} : memref<5x8x128xf32, #tpu.memory_space<vmem>>, vector<1x8x128xf32>,
    %c5_i32_12 = arith.constant 5 : i32
    %22 = arith.muli %arg1, %c5_i32_12 : i32
    %c1_i32 = arith.constant 1 : i32
    %23 = arith.addi %22, %c1_i32 : i32
    %c0_13 = arith.constant 0 : index
    %24 = arith.index_cast %23 : i32 to index
    %25 = memref.load %arg2[%c0_13, %24] : memref<1x5xf32, #tpu.memory_space<smem>>
    %26 = arith.addf %18, %5 : vector<8x128xf32>
    %cst_14 = arith.constant dense<0.000000e+00> : vector<8x128xf32>
    %27 = tpu.matmul %18, %4, %cst_14 {dimension_numbers = #tpu.dot_dimension_numbers<[1], [0], [0], [1], [0, 0, 1, 1], [], []>} : vector<8x128xf32>, vector<128x128xf32>, vector<8x128xf32> -> vector<8x128xf32>
    %28 = arith.subf %26, %27 : vector<8x128xf32>
    %cst_15 = arith.constant 0.000000e+00 : f32
    %29 = arith.subf %cst_15, %25 : f32
    %30 = vector.broadcast %29 : f32 to vector<8x128xf32>
    %31 = arith.maximumf %30, %28 : vector<8x128xf32>
    %32 = vector.broadcast %25 : f32 to vector<8x128xf32>
    %33 = arith.minimumf %32, %31 : vector<8x128xf32>
    %34 = arith.subf %28, %33 : vector<8x128xf32>
    %c1 = arith.constant 1 : index
    %c0_16 = arith.constant 0 : index
    %c0_17 = arith.constant 0 : index
    %35 = vector.load %arg6[%c1, %c0_16, %c0_17] : memref<5x8x128xf32, #tpu.memory_space<vmem>>, vector<1x8x128xf32>
    %36 = vector.shape_cast %35 : vector<1x8x128xf32> to vector<8x128xf32>
    %37 = vector.shape_cast %34 : vector<8x128xf32> to vector<1x8x128xf32>
    tpu.vector_store %arg6[%c1, %c0_16, %c0_17], %37 {strides = array<i32>} : memref<5x8x128xf32, #tpu.memory_space<vmem>>, vector<1x8x128xf32>,
    %c5_i32_18 = arith.constant 5 : i32
    %38 = arith.muli %arg1, %c5_i32_18 : i32
    %c2_i32 = arith.constant 2 : i32
    %39 = arith.addi %38, %c2_i32 : i32
    %c0_19 = arith.constant 0 : index
    %40 = arith.index_cast %39 : i32 to index
    %41 = memref.load %arg2[%c0_19, %40] : memref<1x5xf32, #tpu.memory_space<smem>>
    %42 = arith.addf %34, %5 : vector<8x128xf32>
    %cst_20 = arith.constant dense<0.000000e+00> : vector<8x128xf32>
    %43 = tpu.matmul %34, %4, %cst_20 {dimension_numbers = #tpu.dot_dimension_numbers<[1], [0], [0], [1], [0, 0, 1, 1], [], []>} : vector<8x128xf32>, vector<128x128xf32>, vector<8x128xf32> -> vector<8x128xf32>
    %44 = arith.subf %42, %43 : vector<8x128xf32>
    %cst_21 = arith.constant 0.000000e+00 : f32
    %45 = arith.subf %cst_21, %41 : f32
    %46 = vector.broadcast %45 : f32 to vector<8x128xf32>
    %47 = arith.maximumf %46, %44 : vector<8x128xf32>
    %48 = vector.broadcast %41 : f32 to vector<8x128xf32>
    %49 = arith.minimumf %48, %47 : vector<8x128xf32>
    %50 = arith.subf %44, %49 : vector<8x128xf32>
    %c2 = arith.constant 2 : index
    %c0_22 = arith.constant 0 : index
    %c0_23 = arith.constant 0 : index
    %51 = vector.load %arg6[%c2, %c0_22, %c0_23] : memref<5x8x128xf32, #tpu.memory_space<vmem>>, vector<1x8x128xf32>
    %52 = vector.shape_cast %51 : vector<1x8x128xf32> to vector<8x128xf32>
    %53 = vector.shape_cast %50 : vector<8x128xf32> to vector<1x8x128xf32>
    tpu.vector_store %arg6[%c2, %c0_22, %c0_23], %53 {strides = array<i32>} : memref<5x8x128xf32, #tpu.memory_space<vmem>>, vector<1x8x128xf32>,
    %c5_i32_24 = arith.constant 5 : i32
    %54 = arith.muli %arg1, %c5_i32_24 : i32
    %c3_i32 = arith.constant 3 : i32
    %55 = arith.addi %54, %c3_i32 : i32
    %c0_25 = arith.constant 0 : index
    %56 = arith.index_cast %55 : i32 to index
    %57 = memref.load %arg2[%c0_25, %56] : memref<1x5xf32, #tpu.memory_space<smem>>
    %58 = arith.addf %50, %5 : vector<8x128xf32>
    %cst_26 = arith.constant dense<0.000000e+00> : vector<8x128xf32>
    %59 = tpu.matmul %50, %4, %cst_26 {dimension_numbers = #tpu.dot_dimension_numbers<[1], [0], [0], [1], [0, 0, 1, 1], [], []>} : vector<8x128xf32>, vector<128x128xf32>, vector<8x128xf32> -> vector<8x128xf32>
    %60 = arith.subf %58, %59 : vector<8x128xf32>
    %cst_27 = arith.constant 0.000000e+00 : f32
    %61 = arith.subf %cst_27, %57 : f32
    %62 = vector.broadcast %61 : f32 to vector<8x128xf32>
    %63 = arith.maximumf %62, %60 : vector<8x128xf32>
    %64 = vector.broadcast %57 : f32 to vector<8x128xf32>
    %65 = arith.minimumf %64, %63 : vector<8x128xf32>
    %66 = arith.subf %60, %65 : vector<8x128xf32>
    %c3 = arith.constant 3 : index
    %c0_28 = arith.constant 0 : index
    %c0_29 = arith.constant 0 : index
    %67 = vector.load %arg6[%c3, %c0_28, %c0_29] : memref<5x8x128xf32, #tpu.memory_space<vmem>>, vector<1x8x128xf32>
    %68 = vector.shape_cast %67 : vector<1x8x128xf32> to vector<8x128xf32>
    %69 = vector.shape_cast %66 : vector<8x128xf32> to vector<1x8x128xf32>
    tpu.vector_store %arg6[%c3, %c0_28, %c0_29], %69 {strides = array<i32>} : memref<5x8x128xf32, #tpu.memory_space<vmem>>, vector<1x8x128xf32>,
    %c5_i32_30 = arith.constant 5 : i32
    %70 = arith.muli %arg1, %c5_i32_30 : i32
    %c4_i32 = arith.constant 4 : i32
    %71 = arith.addi %70, %c4_i32 : i32
    %c0_31 = arith.constant 0 : index
    %72 = arith.index_cast %71 : i32 to index
    %73 = memref.load %arg2[%c0_31, %72] : memref<1x5xf32, #tpu.memory_space<smem>>
    %74 = arith.addf %66, %5 : vector<8x128xf32>
    %cst_32 = arith.constant dense<0.000000e+00> : vector<8x128xf32>
    %75 = tpu.matmul %66, %4, %cst_32 {dimension_numbers = #tpu.dot_dimension_numbers<[1], [0], [0], [1], [0, 0, 1, 1], [], []>} : vector<8x128xf32>, vector<128x128xf32>, vector<8x128xf32> -> vector<8x128xf32>
    %76 = arith.subf %74, %75 : vector<8x128xf32>
    %cst_33 = arith.constant 0.000000e+00 : f32
    %77 = arith.subf %cst_33, %73 : f32
    %78 = vector.broadcast %77 : f32 to vector<8x128xf32>
    %79 = arith.maximumf %78, %76 : vector<8x128xf32>
    %80 = vector.broadcast %73 : f32 to vector<8x128xf32>
    %81 = arith.minimumf %80, %79 : vector<8x128xf32>
    %82 = arith.subf %76, %81 : vector<8x128xf32>
    %c4 = arith.constant 4 : index
    %c0_34 = arith.constant 0 : index
    %c0_35 = arith.constant 0 : index
    %83 = vector.load %arg6[%c4, %c0_34, %c0_35] : memref<5x8x128xf32, #tpu.memory_space<vmem>>, vector<1x8x128xf32>
    %84 = vector.shape_cast %83 : vector<1x8x128xf32> to vector<8x128xf32>
    %85 = vector.shape_cast %82 : vector<8x128xf32> to vector<1x8x128xf32>
    tpu.vector_store %arg6[%c4, %c0_34, %c0_35], %85 {strides = array<i32>} : memref<5x8x128xf32, #tpu.memory_space<vmem>>, vector<1x8x128xf32>,
    %c0_36 = arith.constant 0 : index
    %c0_37 = arith.constant 0 : index
    %86 = vector.load %arg7[%c0_36, %c0_37] : memref<8x128xf32, #tpu.memory_space<vmem>>, vector<8x128xf32>
    tpu.vector_store %arg7[%c0_36, %c0_37], %82 {strides = array<i32>} : memref<8x128xf32, #tpu.memory_space<vmem>>, vector<8x128xf32>,
    return
  }
  func.func @transform_0(%arg0: i32, %arg1: i32) -> (i32, i32) {
    %c0_i32 = arith.constant 0 : i32
    %c0_i32_0 = arith.constant 0 : i32
    %c0_i32_1 = arith.constant 0 : i32
    return %c0_i32, %c0_i32_0 : i32, i32
  }
  func.func @transform_1(%arg0: i32, %arg1: i32) -> (i32, i32) {
    %c0_i32 = arith.constant 0 : i32
    %c0_i32_0 = arith.constant 0 : i32
    return %arg0, %c0_i32 : i32, i32
  }
  func.func @transform_2(%arg0: i32, %arg1: i32) -> (i32, i32) {
    %c0_i32 = arith.constant 0 : i32
    %c0_i32_0 = arith.constant 0 : i32
    %c0_i32_1 = arith.constant 0 : i32
    return %c0_i32, %c0_i32_0 : i32, i32
  }
  func.func @transform_3(%arg0: i32, %arg1: i32) -> (i32, i32) {
    %c0_i32 = arith.constant 0 : i32
    %c0_i32_0 = arith.constant 0 : i32
    return %arg0, %c0_i32 : i32, i32
  }
  func.func @transform_4(%arg0: i32, %arg1: i32) -> (i32, i32, i32) {
    %c0_i32 = arith.constant 0 : i32
    %c0_i32_0 = arith.constant 0 : i32
    return %arg1, %arg0, %c0_i32 : i32, i32, i32
  }
}

</mosaic_0001>

<llo_original>
// kernel: tpu_custom_call.1
$region0: #{tpu_custom_call.1}
  #allocation0 [shape = 'u32[]', space=smem, size = 0x4, offset = 0x4, fixed_abs, tag = 'smem constant byte address 0x4 - core index']
  #allocation1 [shape = 'u32[144,128]{1,0:T(1,128)}', space=vmem, size = 0x12000, scoped, tag = 'internal scratch']
  #allocation2 [shape = 'f32[8,128]{1,0:T(8,128)}', space=vmem, size = 0x1000, scoped, tag = 'scratch operand']
  %s0 = inlined_call_operand.hbm [shape: f32[1,5], index: 0, kind: input, shape index: {}]
  %s1 = inlined_call_operand.hbm [shape: f32[8,128], index: 1, kind: input, shape index: {}]
  %s2 = inlined_call_operand.hbm [shape: f32[128,128], index: 2, kind: input, shape index: {}]
  %s3 = inlined_call_operand.vmem [shape: f32[8,128], index: 3, kind: input, shape index: {}]
  %s4 = inlined_call_operand.hbm [shape: f32[5,8,128], index: 4, kind: output, shape index: {}]
  %s5 = sld [smem:[#allocation0]]
  $region42: #{tpu_custom_call.1} parent=0
    _
  %s7 = ssub.s32 1, %s5
  %s8 = scalar_select 0, %s7, %s5
  $region1: #{tpu_custom_call.1} parent=0
    #allocation3 [shape = 'u8[512]{0}', space=smem, size = 0x200, scoped, tag = 'input window, operand 0, single buffered']
    #allocation4 [shape = 's32[1]{0}', space=sflag, size = 0x4, scoped, tag = 'scoped memory for tpu_custom_call.1']
    #allocation5 [shape = 's32[1]{0}', space=sflag, size = 0x4, scoped, tag = 'scoped memory for tpu_custom_call.1']
    #allocation6 [shape = 's32[1]{0}', space=sflag, size = 0x4, scoped, tag = 'scoped memory for tpu_custom_call.1']
    #allocation7 [shape = 'u8[4096]{0}', space=vmem, size = 0x1000, scoped, tag = 'input window, operand 1, single buffered']
    #allocation8 [shape = 'u8[65536]{0}', space=vmem, size = 0x10000, scoped, tag = 'input window, operand 2, single buffered']
    #allocation9 [shape = 's32[1]{0}', space=sflag, size = 0x4, scoped, tag = 'scoped memory for tpu_custom_call.1']
    #allocation10 [shape = 'u8[20480]{0}', space=vmem, size = 0x5000, scoped, tag = 'output window, operand 0, single buffered']
    %9 = vsyncpa [#allocation6], 0
    %10 = vsyncpa [#allocation4], 0
    %11 = vsyncpa [#allocation9], 0
    %12 = vsyncpa [#allocation5], 0
    // Predicated region
    $region2: #{tpu_custom_call.1} parent=1 // pred_check
      _
    $region3: #{tpu_custom_call.1} parent=1 // pred_check_branch
      %14 = sbr.rel (0) target = $region5
    $region4: #{tpu_custom_call.1} parent=1 // pred_region
      %s16 = ssub.s32 16, 16
      %17 = vsyncadd [#allocation6], %s16
      %20 = dma.hbm_to_smem %s0, 16, [#allocation3], [#allocation6]
    $region5: #{tpu_custom_call.1} parent=1 // pred_fallthru
      _
    // Predicated region
    $region6: #{tpu_custom_call.1} parent=1 // pred_check
      _
    $region7: #{tpu_custom_call.1} parent=1 // pred_check_branch
      %22 = sbr.rel (0) target = $region9
    $region8: #{tpu_custom_call.1} parent=1 // pred_region
      %s24 = ssub.s32 128, 128
      %25 = vsyncadd [#allocation4], %s24
      %s27 = sshll.u32 [#allocation7], 4
      %s28 = int_to_ptr.vmem [resolvable:$true] %s27
      %30 = dma.hbm_to_vmem [thread:$0]  %s1, 128, %s28, [#allocation4]
    $region9: #{tpu_custom_call.1} parent=1 // pred_fallthru
      _
    // Predicated region
    $region10: #{tpu_custom_call.1} parent=1 // pred_check
      _
    $region11: #{tpu_custom_call.1} parent=1 // pred_check_branch
      %32 = sbr.rel (0) target = $region13
    $region12: #{tpu_custom_call.1} parent=1 // pred_region
      %s34 = ssub.s32 2048, 2048
      %35 = vsyncadd [#allocation9], %s34
      %s36 = sshll.u32 [#allocation8], 4
      %s37 = int_to_ptr.vmem [resolvable:$true] %s36
      %42 = dma.hbm_to_vmem [thread:$0]  %s2, 2048, %s37, [#allocation9], 128, 128, 8
    $region13: #{tpu_custom_call.1} parent=1 // pred_fallthru
      _
    // Predicated region
    $region14: #{tpu_custom_call.1} parent=1 // pred_check
      _
    $region15: #{tpu_custom_call.1} parent=1 // pred_check_branch
      %44 = sbr.rel (0) target = $region17
    $region16: #{tpu_custom_call.1} parent=1 // pred_region
      _
    $region17: #{tpu_custom_call.1} parent=1 // pred_fallthru
      _
    // Predicated region
    $region18: #{tpu_custom_call.1} parent=1 // pred_check
      _
    $region19: #{tpu_custom_call.1} parent=1 // pred_check_branch
      %46 = sbr.rel (0) target = $region21
    $region20: #{tpu_custom_call.1} parent=1 // pred_region
      %47 = dma.done [#allocation6], 16
    $region21: #{tpu_custom_call.1} parent=1 // pred_fallthru
      _
    // Predicated region
    $region22: #{tpu_custom_call.1} parent=1 // pred_check
      _
    $region23: #{tpu_custom_call.1} parent=1 // pred_check_branch
      %49 = sbr.rel (0) target = $region25
    $region24: #{tpu_custom_call.1} parent=1 // pred_region
      %50 = dma.done [#allocation4], 128
    $region25: #{tpu_custom_call.1} parent=1 // pred_fallthru
      _
    // Predicated region
    $region26: #{tpu_custom_call.1} parent=1 // pred_check
      _
    $region27: #{tpu_custom_call.1} parent=1 // pred_check_branch
      %52 = sbr.rel (0) target = $region29
    $region28: #{tpu_custom_call.1} parent=1 // pred_region
      %53 = dma.done [#allocation9], 2048
    $region29: #{tpu_custom_call.1} parent=1 // pred_fallthru
      _
    %54 = sfence
    %p55 = scmp.eq.s32.totalorder 0, 0
    // Predicated region
    $region30: #{tpu_custom_call.1} parent=1 // pred_check
      %p56 = pneg %p55
    $region31: #{tpu_custom_call.1} parent=1 // pred_check_branch
      %58 = sbr.rel (%p56) target = $region33
    $region32: #{tpu_custom_call.1} parent=1 // pred_region
      %v59 = vld [vmem:[#allocation7] sm:$0xff]
      %60 = vst [vmem:[#allocation2] sm:$0xff] %v59
    $region33: #{tpu_custom_call.1} parent=1 // pred_fallthru
      _
    %v61 = vld [vmem:[#allocation2] sm:$0xff]
    %v62 = vld [vmem:[#allocation8] sm:$0xff]
    %v63 = vld [vmem:[#allocation8 + $0x8] sm:$0xff]
    %v64 = vld [vmem:[#allocation8 + $0x10] sm:$0xff]
    %v65 = vld [vmem:[#allocation8 + $0x18] sm:$0xff]
    %v66 = vld [vmem:[#allocation8 + $0x20] sm:$0xff]
    %v67 = vld [vmem:[#allocation8 + $0x28] sm:$0xff]
    %v68 = vld [vmem:[#allocation8 + $0x30] sm:$0xff]
    %v69 = vld [vmem:[#allocation8 + $0x38] sm:$0xff]
    %v70 = vld [vmem:[#allocation8 + $0x40] sm:$0xff]
    %v71 = vld [vmem:[#allocation8 + $0x48] sm:$0xff]
    %v72 = vld [vmem:[#allocation8 + $0x50] sm:$0xff]
    %v73 = vld [vmem:[#allocation8 + $0x58] sm:$0xff]
    %v74 = vld [vmem:[#allocation8 + $0x60] sm:$0xff]
    %v75 = vld [vmem:[#allocation8 + $0x68] sm:$0xff]
    %v76 = vld [vmem:[#allocation8 + $0x70] sm:$0xff]
    %v77 = vld [vmem:[#allocation8 + $0x78] sm:$0xff]
    %v78 = vld [vmem:[%s3] sm:$0xff]
    %s79 = smul.u32 0, 5
    %s80 = sld [smem:[#allocation3 + %s79]]
    %v81 = vadd.f32 %v61, %v78
    %82 = vmatprep.subr.mxu0 0.0
    %83 = vmatpush1.msra.mxu0 %v62
    %84 = vmatprep.subr.mxu0 0.0
    %85 = vmatpush1.msra.mxu0 %v63
    %86 = vmatprep.subr.mxu0 0.0
    %87 = vmatpush1.msra.mxu0 %v64
    %88 = vmatprep.subr.mxu0 0.0
    %89 = vmatpush1.msra.mxu0 %v65
    %90 = vmatprep.subr.mxu0 0.0
    %91 = vmatpush1.msra.mxu0 %v66
    %92 = vmatprep.subr.mxu0 0.0
    %93 = vmatpush1.msra.mxu0 %v67
    %94 = vmatprep.subr.mxu0 0.0
    %95 = vmatpush1.msra.mxu0 %v68
    %96 = vmatprep.subr.mxu0 0.0
    %97 = vmatpush1.msra.mxu0 %v69
    %98 = vmatprep.subr.mxu0 0.0
    %99 = vmatpush1.msra.mxu0 %v70
    %100 = vmatprep.subr.mxu0 0.0
    %101 = vmatpush1.msra.mxu0 %v71
    %102 = vmatprep.subr.mxu0 0.0
    %103 = vmatpush1.msra.mxu0 %v72
    %104 = vmatprep.subr.mxu0 0.0
    %105 = vmatpush1.msra.mxu0 %v73
    %106 = vmatprep.subr.mxu0 0.0
    %107 = vmatpush1.msra.mxu0 %v74
    %108 = vmatprep.subr.mxu0 0.0
    %109 = vmatpush1.msra.mxu0 %v75
    %110 = vmatprep.subr.mxu0 0.0
    %111 = vmatpush1.msra.mxu0 %v76
    %112 = vmatprep.subr.mxu0 0.0
    %113 = vmatpush1.msra.mxu0 %v77
    %114 = vmatprep.subr.mxu0 0.0
    %115 = vmatpush1.msra.mxu0 0.0
    %116 = vmatprep.subr.mxu0 0.0
    %117 = vmatpush1.msra.mxu0 0.0
    %118 = vmatprep.subr.mxu0 0.0
    %119 = vmatpush1.msra.mxu0 0.0
    %120 = vmatprep.subr.mxu0 0.0
    %121 = vmatpush1.msra.mxu0 0.0
    %122 = vmatprep.subr.mxu0 0.0
    %123 = vmatpush1.msra.mxu0 0.0
    %124 = vmatprep.subr.mxu0 0.0
    %125 = vmatpush1.msra.mxu0 0.0
    %126 = vmatprep.subr.mxu0 0.0
    %127 = vmatpush1.msra.mxu0 0.0
    %128 = vmatprep.subr.mxu0 0.0
    %129 = vmatpush1.msra.mxu0 0.0
    %130 = vmatprep.subr.mxu0 0.0
    %131 = vmatpush1.msra.mxu0 0.0
    %132 = vmatprep.subr.mxu0 0.0
    %133 = vmatpush1.msra.mxu0 0.0
    %134 = vmatprep.subr.mxu0 0.0
    %135 = vmatpush1.msra.mxu0 0.0
    %136 = vmatprep.subr.mxu0 0.0
    %137 = vmatpush1.msra.mxu0 0.0
    %138 = vmatprep.subr.mxu0 0.0
    %139 = vmatpush1.msra.mxu0 0.0
    %140 = vmatprep.subr.mxu0 0.0
    %141 = vmatpush1.msra.mxu0 0.0
    %142 = vmatprep.subr.mxu0 0.0
    %143 = vmatpush1.msra.mxu0 0.0
    %144 = vmatprep.subr.mxu0 0.0
    %145 = vmatpush1.msra.mxu0 0.0
    %146 = vmatprep.mubr.f32.mxu0 0.0
    %147 = vmatmul.mubr.f32.gmra.mrb[0].mxu0 %v61
    %v148 = vpop.f32.mrb[0].mxu0
    %v149 = vadd.f32 0.0, %v148
    %v150 = vpop.f32.mrb[0].mxu0
    %151 = vdwg.mxu0
    %v152 = vsub.f32 %v81, %v149
    %s153 = ssub.f32 0.0, %s80
    %v154 = vstv %s153
    %v155 = vmax.f32 %v154, %v152
    %v156 = vstv %s80
    %v157 = vmin.f32 %v156, %v155
    %v158 = vsub.f32 %v152, %v157
    %159 = vst [vmem:[#allocation10] sm:$0xff] %v158
    %s160 = sadd.s32 %s79, 1
    %s161 = sld [smem:[#allocation3 + %s160]]
    %v162 = vadd.f32 %v158, %v78
    %163 = vmatprep.subr.mxu0 0.0
    %164 = vmatpush1.msra.mxu0 %v62
    %165 = vmatprep.subr.mxu0 0.0
    %166 = vmatpush1.msra.mxu0 %v63
    %167 = vmatprep.subr.mxu0 0.0
    %168 = vmatpush1.msra.mxu0 %v64
    %169 = vmatprep.subr.mxu0 0.0
    %170 = vmatpush1.msra.mxu0 %v65
    %171 = vmatprep.subr.mxu0 0.0
    %172 = vmatpush1.msra.mxu0 %v66
    %173 = vmatprep.subr.mxu0 0.0
    %174 = vmatpush1.msra.mxu0 %v67
    %175 = vmatprep.subr.mxu0 0.0
    %176 = vmatpush1.msra.mxu0 %v68
    %177 = vmatprep.subr.mxu0 0.0
    %178 = vmatpush1.msra.mxu0 %v69
    %179 = vmatprep.subr.mxu0 0.0
    %180 = vmatpush1.msra.mxu0 %v70
    %181 = vmatprep.subr.mxu0 0.0
    %182 = vmatpush1.msra.mxu0 %v71
    %183 = vmatprep.subr.mxu0 0.0
    %184 = vmatpush1.msra.mxu0 %v72
    %185 = vmatprep.subr.mxu0 0.0
    %186 = vmatpush1.msra.mxu0 %v73
    %187 = vmatprep.subr.mxu0 0.0
    %188 = vmatpush1.msra.mxu0 %v74
    %189 = vmatprep.subr.mxu0 0.0
    %190 = vmatpush1.msra.mxu0 %v75
    %191 = vmatprep.subr.mxu0 0.0
    %192 = vmatpush1.msra.mxu0 %v76
    %193 = vmatprep.subr.mxu0 0.0
    %194 = vmatpush1.msra.mxu0 %v77
    %195 = vmatprep.subr.mxu0 0.0
    %196 = vmatpush1.msra.mxu0 0.0
    %197 = vmatprep.subr.mxu0 0.0
    %198 = vmatpush1.msra.mxu0 0.0
    %199 = vmatprep.subr.mxu0 0.0
    %200 = vmatpush1.msra.mxu0 0.0
    %201 = vmatprep.subr.mxu0 0.0
    %202 = vmatpush1.msra.mxu0 0.0
    %203 = vmatprep.subr.mxu0 0.0
    %204 = vmatpush1.msra.mxu0 0.0
    %205 = vmatprep.subr.mxu0 0.0
    %206 = vmatpush1.msra.mxu0 0.0
    %207 = vmatprep.subr.mxu0 0.0
    %208 = vmatpush1.msra.mxu0 0.0
    %209 = vmatprep.subr.mxu0 0.0
    %210 = vmatpush1.msra.mxu0 0.0
    %211 = vmatprep.subr.mxu0 0.0
    %212 = vmatpush1.msra.mxu0 0.0
    %213 = vmatprep.subr.mxu0 0.0
    %214 = vmatpush1.msra.mxu0 0.0
    %215 = vmatprep.subr.mxu0 0.0
    %216 = vmatpush1.msra.mxu0 0.0
    %217 = vmatprep.subr.mxu0 0.0
    %218 = vmatpush1.msra.mxu0 0.0
    %219 = vmatprep.subr.mxu0 0.0
    %220 = vmatpush1.msra.mxu0 0.0
    %221 = vmatprep.subr.mxu0 0.0
    %222 = vmatpush1.msra.mxu0 0.0
    %223 = vmatprep.subr.mxu0 0.0
    %224 = vmatpush1.msra.mxu0 0.0
    %225 = vmatprep.subr.mxu0 0.0
    %226 = vmatpush1.msra.mxu0 0.0
    %227 = vmatprep.mubr.f32.mxu0 0.0
    %228 = vmatmul.mubr.f32.gmra.mrb[0].mxu0 %v158
    %v229 = vpop.f32.mrb[0].mxu0
    %v230 = vadd.f32 0.0, %v229
    %v231 = vpop.f32.mrb[0].mxu0
    %232 = vdwg.mxu0
    %v233 = vsub.f32 %v162, %v230
    %s234 = ssub.f32 0.0, %s161
    %v235 = vstv %s234
    %v236 = vmax.f32 %v235, %v233
    %v237 = vstv %s161
    %v238 = vmin.f32 %v237, %v236
    %v239 = vsub.f32 %v233, %v238
    %s240 = scalar_lea.vmem [#allocation10], 8
    %241 = vst [vmem:[%s240] sm:$0xff] %v239
    %s242 = sadd.s32 %s79, 2
    %s243 = sld [smem:[#allocation3 + %s242]]
    %v244 = vadd.f32 %v239, %v78
    %245 = vmatprep.subr.mxu0 0.0
    %246 = vmatpush1.msra.mxu0 %v62
    %247 = vmatprep.subr.mxu0 0.0
    %248 = vmatpush1.msra.mxu0 %v63
    %249 = vmatprep.subr.mxu0 0.0
    %250 = vmatpush1.msra.mxu0 %v64
    %251 = vmatprep.subr.mxu0 0.0
    %252 = vmatpush1.msra.mxu0 %v65
    %253 = vmatprep.subr.mxu0 0.0
    %254 = vmatpush1.msra.mxu0 %v66
    %255 = vmatprep.subr.mxu0 0.0
    %256 = vmatpush1.msra.mxu0 %v67
    %257 = vmatprep.subr.mxu0 0.0
    %258 = vmatpush1.msra.mxu0 %v68
    %259 = vmatprep.subr.mxu0 0.0
    %260 = vmatpush1.msra.mxu0 %v69
    %261 = vmatprep.subr.mxu0 0.0
    %262 = vmatpush1.msra.mxu0 %v70
    %263 = vmatprep.subr.mxu0 0.0
    %264 = vmatpush1.msra.mxu0 %v71
    %265 = vmatprep.subr.mxu0 0.0
    %266 = vmatpush1.msra.mxu0 %v72
    %267 = vmatprep.subr.mxu0 0.0
    %268 = vmatpush1.msra.mxu0 %v73
    %269 = vmatprep.subr.mxu0 0.0
    %270 = vmatpush1.msra.mxu0 %v74
    %271 = vmatprep.subr.mxu0 0.0
    %272 = vmatpush1.msra.mxu0 %v75
    %273 = vmatprep.subr.mxu0 0.0
    %274 = vmatpush1.msra.mxu0 %v76
    %275 = vmatprep.subr.mxu0 0.0
    %276 = vmatpush1.msra.mxu0 %v77
    %277 = vmatprep.subr.mxu0 0.0
    %278 = vmatpush1.msra.mxu0 0.0
    %279 = vmatprep.subr.mxu0 0.0
    %280 = vmatpush1.msra.mxu0 0.0
    %281 = vmatprep.subr.mxu0 0.0
    %282 = vmatpush1.msra.mxu0 0.0
    %283 = vmatprep.subr.mxu0 0.0
    %284 = vmatpush1.msra.mxu0 0.0
    %285 = vmatprep.subr.mxu0 0.0
    %286 = vmatpush1.msra.mxu0 0.0
    %287 = vmatprep.subr.mxu0 0.0
    %288 = vmatpush1.msra.mxu0 0.0
    %289 = vmatprep.subr.mxu0 0.0
    %290 = vmatpush1.msra.mxu0 0.0
    %291 = vmatprep.subr.mxu0 0.0
    %292 = vmatpush1.msra.mxu0 0.0
    %293 = vmatprep.subr.mxu0 0.0
    %294 = vmatpush1.msra.mxu0 0.0
    %295 = vmatprep.subr.mxu0 0.0
    %296 = vmatpush1.msra.mxu0 0.0
    %297 = vmatprep.subr.mxu0 0.0
    %298 = vmatpush1.msra.mxu0 0.0
    %299 = vmatprep.subr.mxu0 0.0
    %300 = vmatpush1.msra.mxu0 0.0
    %301 = vmatprep.subr.mxu0 0.0
    %302 = vmatpush1.msra.mxu0 0.0
    %303 = vmatprep.subr.mxu0 0.0
    %304 = vmatpush1.msra.mxu0 0.0
    %305 = vmatprep.subr.mxu0 0.0
    %306 = vmatpush1.msra.mxu0 0.0
    %307 = vmatprep.subr.mxu0 0.0
    %308 = vmatpush1.msra.mxu0 0.0
    %309 = vmatprep.mubr.f32.mxu0 0.0
    %310 = vmatmul.mubr.f32.gmra.mrb[0].mxu0 %v239
    %v311 = vpop.f32.mrb[0].mxu0
    %v312 = vadd.f32 0.0, %v311
    %v313 = vpop.f32.mrb[0].mxu0
    %314 = vdwg.mxu0
    %v315 = vsub.f32 %v244, %v312
    %s316 = ssub.f32 0.0, %s243
    %v317 = vstv %s316
    %v318 = vmax.f32 %v317, %v315
    %v319 = vstv %s243
    %v320 = vmin.f32 %v319, %v318
    %v321 = vsub.f32 %v315, %v320
    %s322 = scalar_lea.vmem [#allocation10], 16
    %323 = vst [vmem:[%s322] sm:$0xff] %v321
    %s324 = sadd.s32 %s79, 3
    %s325 = sld [smem:[#allocation3 + %s324]]
    %v326 = vadd.f32 %v321, %v78
    %327 = vmatprep.subr.mxu0 0.0
    %328 = vmatpush1.msra.mxu0 %v62
    %329 = vmatprep.subr.mxu0 0.0
    %330 = vmatpush1.msra.mxu0 %v63
    %331 = vmatprep.subr.mxu0 0.0
    %332 = vmatpush1.msra.mxu0 %v64
    %333 = vmatprep.subr.mxu0 0.0
    %334 = vmatpush1.msra.mxu0 %v65
    %335 = vmatprep.subr.mxu0 0.0
    %336 = vmatpush1.msra.mxu0 %v66
    %337 = vmatprep.subr.mxu0 0.0
    %338 = vmatpush1.msra.mxu0 %v67
    %339 = vmatprep.subr.mxu0 0.0
    %340 = vmatpush1.msra.mxu0 %v68
    %341 = vmatprep.subr.mxu0 0.0
    %342 = vmatpush1.msra.mxu0 %v69
    %343 = vmatprep.subr.mxu0 0.0
    %344 = vmatpush1.msra.mxu0 %v70
    %345 = vmatprep.subr.mxu0 0.0
    %346 = vmatpush1.msra.mxu0 %v71
    %347 = vmatprep.subr.mxu0 0.0
    %348 = vmatpush1.msra.mxu0 %v72
    %349 = vmatprep.subr.mxu0 0.0
    %350 = vmatpush1.msra.mxu0 %v73
    %351 = vmatprep.subr.mxu0 0.0
    %352 = vmatpush1.msra.mxu0 %v74
    %353 = vmatprep.subr.mxu0 0.0
    %354 = vmatpush1.msra.mxu0 %v75
    %355 = vmatprep.subr.mxu0 0.0
    %356 = vmatpush1.msra.mxu0 %v76
    %357 = vmatprep.subr.mxu0 0.0
    %358 = vmatpush1.msra.mxu0 %v77
    %359 = vmatprep.subr.mxu0 0.0
    %360 = vmatpush1.msra.mxu0 0.0
    %361 = vmatprep.subr.mxu0 0.0
    %362 = vmatpush1.msra.mxu0 0.0
    %363 = vmatprep.subr.mxu0 0.0
    %364 = vmatpush1.msra.mxu0 0.0
    %365 = vmatprep.subr.mxu0 0.0
    %366 = vmatpush1.msra.mxu0 0.0
    %367 = vmatprep.subr.mxu0 0.0
    %368 = vmatpush1.msra.mxu0 0.0
    %369 = vmatprep.subr.mxu0 0.0
    %370 = vmatpush1.msra.mxu0 0.0
    %371 = vmatprep.subr.mxu0 0.0
    %372 = vmatpush1.msra.mxu0 0.0
    %373 = vmatprep.subr.mxu0 0.0
    %374 = vmatpush1.msra.mxu0 0.0
    %375 = vmatprep.subr.mxu0 0.0
    %376 = vmatpush1.msra.mxu0 0.0
    %377 = vmatprep.subr.mxu0 0.0
    %378 = vmatpush1.msra.mxu0 0.0
    %379 = vmatprep.subr.mxu0 0.0
    %380 = vmatpush1.msra.mxu0 0.0
    %381 = vmatprep.subr.mxu0 0.0
    %382 = vmatpush1.msra.mxu0 0.0
    %383 = vmatprep.subr.mxu0 0.0
    %384 = vmatpush1.msra.mxu0 0.0
    %385 = vmatprep.subr.mxu0 0.0
    %386 = vmatpush1.msra.mxu0 0.0
    %387 = vmatprep.subr.mxu0 0.0
    %388 = vmatpush1.msra.mxu0 0.0
    %389 = vmatprep.subr.mxu0 0.0
    %390 = vmatpush1.msra.mxu0 0.0
    %391 = vmatprep.mubr.f32.mxu0 0.0
    %392 = vmatmul.mubr.f32.gmra.mrb[0].mxu0 %v321
    %v393 = vpop.f32.mrb[0].mxu0
    %v394 = vadd.f32 0.0, %v393
    %v395 = vpop.f32.mrb[0].mxu0
    %396 = vdwg.mxu0
    %v397 = vsub.f32 %v326, %v394
    %s398 = ssub.f32 0.0, %s325
    %v399 = vstv %s398
    %v400 = vmax.f32 %v399, %v397
    %v401 = vstv %s325
    %v402 = vmin.f32 %v401, %v400
    %v403 = vsub.f32 %v397, %v402
    %s404 = scalar_lea.vmem [#allocation10], 24
    %405 = vst [vmem:[%s404] sm:$0xff] %v403
    %s406 = sadd.s32 %s79, 4
    %s407 = sld [smem:[#allocation3 + %s406]]
    %v408 = vadd.f32 %v403, %v78
    %409 = vmatprep.subr.mxu0 0.0
    %410 = vmatpush1.msra.mxu0 %v62
    %411 = vmatprep.subr.mxu0 0.0
    %412 = vmatpush1.msra.mxu0 %v63
    %413 = vmatprep.subr.mxu0 0.0
    %414 = vmatpush1.msra.mxu0 %v64
    %415 = vmatprep.subr.mxu0 0.0
    %416 = vmatpush1.msra.mxu0 %v65
    %417 = vmatprep.subr.mxu0 0.0
    %418 = vmatpush1.msra.mxu0 %v66
    %419 = vmatprep.subr.mxu0 0.0
    %420 = vmatpush1.msra.mxu0 %v67
    %421 = vmatprep.subr.mxu0 0.0
    %422 = vmatpush1.msra.mxu0 %v68
    %423 = vmatprep.subr.mxu0 0.0
    %424 = vmatpush1.msra.mxu0 %v69
    %425 = vmatprep.subr.mxu0 0.0
    %426 = vmatpush1.msra.mxu0 %v70
    %427 = vmatprep.subr.mxu0 0.0
    %428 = vmatpush1.msra.mxu0 %v71
    %429 = vmatprep.subr.mxu0 0.0
    %430 = vmatpush1.msra.mxu0 %v72
    %431 = vmatprep.subr.mxu0 0.0
    %432 = vmatpush1.msra.mxu0 %v73
    %433 = vmatprep.subr.mxu0 0.0
    %434 = vmatpush1.msra.mxu0 %v74
    %435 = vmatprep.subr.mxu0 0.0
    %436 = vmatpush1.msra.mxu0 %v75
    %437 = vmatprep.subr.mxu0 0.0
    %438 = vmatpush1.msra.mxu0 %v76
    %439 = vmatprep.subr.mxu0 0.0
    %440 = vmatpush1.msra.mxu0 %v77
    %441 = vmatprep.subr.mxu0 0.0
    %442 = vmatpush1.msra.mxu0 0.0
    %443 = vmatprep.subr.mxu0 0.0
    %444 = vmatpush1.msra.mxu0 0.0
    %445 = vmatprep.subr.mxu0 0.0
    %446 = vmatpush1.msra.mxu0 0.0
    %447 = vmatprep.subr.mxu0 0.0
    %448 = vmatpush1.msra.mxu0 0.0
    %449 = vmatprep.subr.mxu0 0.0
    %450 = vmatpush1.msra.mxu0 0.0
    %451 = vmatprep.subr.mxu0 0.0
    %452 = vmatpush1.msra.mxu0 0.0
    %453 = vmatprep.subr.mxu0 0.0
    %454 = vmatpush1.msra.mxu0 0.0
    %455 = vmatprep.subr.mxu0 0.0
    %456 = vmatpush1.msra.mxu0 0.0
    %457 = vmatprep.subr.mxu0 0.0
    %458 = vmatpush1.msra.mxu0 0.0
    %459 = vmatprep.subr.mxu0 0.0
    %460 = vmatpush1.msra.mxu0 0.0
    %461 = vmatprep.subr.mxu0 0.0
    %462 = vmatpush1.msra.mxu0 0.0
    %463 = vmatprep.subr.mxu0 0.0
    %464 = vmatpush1.msra.mxu0 0.0
    %465 = vmatprep.subr.mxu0 0.0
    %466 = vmatpush1.msra.mxu0 0.0
    %467 = vmatprep.subr.mxu0 0.0
    %468 = vmatpush1.msra.mxu0 0.0
    %469 = vmatprep.subr.mxu0 0.0
    %470 = vmatpush1.msra.mxu0 0.0
    %471 = vmatprep.subr.mxu0 0.0
    %472 = vmatpush1.msra.mxu0 0.0
    %473 = vmatprep.mubr.f32.mxu0 0.0
    %474 = vmatmul.mubr.f32.gmra.mrb[0].mxu0 %v403
    %v475 = vpop.f32.mrb[0].mxu0
    %v476 = vadd.f32 0.0, %v475
    %v477 = vpop.f32.mrb[0].mxu0
    %478 = vdwg.mxu0
    %v479 = vsub.f32 %v408, %v476
    %s480 = ssub.f32 0.0, %s407
    %v481 = vstv %s480
    %v482 = vmax.f32 %v481, %v479
    %v483 = vstv %s407
    %v484 = vmin.f32 %v483, %v482
    %v485 = vsub.f32 %v479, %v484
    %s486 = scalar_lea.vmem [#allocation10], 32
    %487 = vst [vmem:[%s486] sm:$0xff] %v485
    %488 = vst [vmem:[#allocation2] sm:$0xff] %v485
    // Predicated region
    $region34: #{tpu_custom_call.1} parent=1 // pred_check
      _
    $region35: #{tpu_custom_call.1} parent=1 // pred_check_branch
      %490 = sbr.rel (0) target = $region37
    $region36: #{tpu_custom_call.1} parent=1 // pred_region
      %s492 = ssub.s32 640, 640
      %493 = vsyncadd [#allocation5], %s492
      %s494 = sshll.u32 [#allocation10], 4
      %s495 = int_to_ptr.vmem [resolvable:$true] %s494
      %500 = dma.vmem_to_hbm [thread:$0]  %s495, 640, %s4, [#allocation5], 128, 128, 8
    $region37: #{tpu_custom_call.1} parent=1 // pred_fallthru
      _
    // Predicated region
    $region38: #{tpu_custom_call.1} parent=1 // pred_check
      _
    $region39: #{tpu_custom_call.1} parent=1 // pred_check_branch
      %502 = sbr.rel (0) target = $region41
    $region40: #{tpu_custom_call.1} parent=1 // pred_region
      %503 = dma.done [#allocation5], 640
    $region41: #{tpu_custom_call.1} parent=1 // pred_fallthru
      _
    %504 = vsyncpa [#allocation4], 1
    %505 = vsyncpa [#allocation9], 1
    %506 = vsyncpa [#allocation5], 1
    %507 = vsyncpa [#allocation6], 1

</llo_original>
